<compile_context>
chip_gen: v7x
topology: tpu7x:2x2x1
jax: 0.10.0
libtpu: 0.0.40
codegen_flags: <defaults>
</compile_context>

<pallas_src>
import math

import jax
import jax.numpy as jnp
from jax.experimental import pallas as pl
from jax.experimental.pallas import tpu as pltpu

D_MODEL = 32          # d_model (small synthetic size; PyTorch default 512)
LN_EPS = 1e-5         # nn.LayerNorm default eps
_VMEM_LIMIT = 48 * 1024 * 1024   # explicit cap; safe on v5e/v6e (128 MiB) and v7x (64 MiB)


def _round_up(n, k):
    return ((n + k - 1) // k) * k


# ------------------------------------------------------------------ kernels

def _time_mlp_kernel(x_ref, p_ref, w2_ref, w3_ref, o_ref):
    # p_ref rows: [w1_row0, w1_row1, b1, b2, b3, gamma, beta]  (7, d) f32
    x = x_ref[...].astype(jnp.float32)        # (tm, 2)
    p = p_ref[...]
    w1r0, w1r1 = p[0:1, :], p[1:2, :]
    b1, b2, b3 = p[2:3, :], p[3:4, :], p[4:5, :]
    gamma, beta = p[5:6, :], p[6:7, :]

    # Layer 1 (K=2): two VPU broadcast-FMAs instead of a degenerate MXU matmul.
    h = x[:, 0:1] * w1r0 + x[:, 1:2] * w1r1 + b1
    h = jnp.maximum(h, 0.0)

    # Layers 2 and 3 on the MXU, f32 accumulation, f32 elementwise.
    h = jnp.dot(h.astype(w2_ref.dtype), w2_ref[...],
                preferred_element_type=jnp.float32) + b2
    h = jnp.maximum(h, 0.0)
    h = jnp.dot(h.astype(w3_ref.dtype), w3_ref[...],
                preferred_element_type=jnp.float32) + b3
    h = jnp.maximum(h, 0.0)

    # LayerNorm over the feature axis (biased variance, eps=1e-5), in f32.
    mean = jnp.mean(h, axis=-1, keepdims=True)
    var = jnp.mean((h - mean) ** 2, axis=-1, keepdims=True)
    hn = (h - mean) * jax.lax.rsqrt(var + LN_EPS)
    o_ref[...] = (hn * gamma + beta).astype(o_ref.dtype)


def _drloc_mlp_kernel(x_ref, p_ref, w1_ref, w2_ref, o_ref):
    # p_ref rows: [b1, b2, w3_row, b3_broadcast]  (4, d) f32
    p = p_ref[...]
    b1, b2, w3r = p[0:1, :], p[1:2, :], p[2:3, :]
    b3 = p[3:4, 0:1]                          # (1, 1) scalar bias

    h = jnp.dot(x_ref[...], w1_ref[...],
                preferred_element_type=jnp.float32) + b1
    h = jnp.maximum(h, 0.0)
    h = jnp.dot(h.astype(w2_ref.dtype), w2_ref[...],
                preferred_element_type=jnp.float32) + b2
    h = jnp.maximum(h, 0.0)
    # Final Linear(d, 1): VPU multiply + lane reduction (no N=1 MXU matmul).
    o_ref[...] = (jnp.sum(h * w3r, axis=-1, keepdims=True) + b3).astype(o_ref.dtype)


# ------------------------------------------------------------------ wrappers

def time_mlp(x, params, *, tm=1024, compute_dtype=jnp.float32):
    """x: (..., 2) float32 -> (..., d). Equivalent to TIM.forward(x, 'time_mlp')."""
    w1, b1, w2, b2, w3, b3, gamma, beta = params
    d = w1.shape[1]
    lead = x.shape[:-1]
    m = math.prod(lead)

    tm = min(_round_up(tm, 8), _round_up(m, 8))
    m_pad = _round_up(m, tm)

    x2 = x.reshape(m, 2).astype(jnp.float32)
    if m_pad != m:
        x2 = jnp.pad(x2, ((0, m_pad - m), (0, 0)))

    # Consolidate all small (per-feature) params into a single f32 stream.
    p = jnp.concatenate([
        w1.astype(jnp.float32),               # (2, d)
        b1.reshape(1, d).astype(jnp.float32),
        b2.reshape(1, d).astype(jnp.float32),
        b3.reshape(1, d).astype(jnp.float32),
        gamma.reshape(1, d).astype(jnp.float32),
        beta.reshape(1, d).astype(jnp.float32),
    ], axis=0)                                # (7, d)

    w2c = w2.astype(compute_dtype)
    w3c = w3.astype(compute_dtype)

    rep = lambda i: (0, 0)
    out = pl.pallas_call(
        _time_mlp_kernel,
        out_shape=jax.ShapeDtypeStruct((m_pad, d), jnp.float32),
        grid_spec=pltpu.PrefetchScalarGridSpec(
            num_scalar_prefetch=0,
            grid=(m_pad // tm,),
            in_specs=[
                pl.BlockSpec((tm, 2), lambda i: (i, 0)),   # x rows
                pl.BlockSpec((7, d), rep),                 # stacked small params
                pl.BlockSpec((d, d), rep),                 # w2
                pl.BlockSpec((d, d), rep),                 # w3
            ],
            out_specs=pl.BlockSpec((tm, d), lambda i: (i, 0)),
        ),
        compiler_params=pltpu.CompilerParams(
            dimension_semantics=("parallel",),
            vmem_limit_bytes=_VMEM_LIMIT),
    )(x2, p, w2c, w3c)

    if m_pad != m:
        out = out[:m]
    return out.reshape(lead + (d,))


def drloc_mlp(x, params, *, tm=1024, compute_dtype=jnp.float32):
    """x: (B, N, 4*d) -> (B, N). Equivalent to TIM.forward(x, 'drloc_mlp')."""
    w1, b1, w2, b2, w3, b3 = params
    din, d = w1.shape
    lead = x.shape[:-1]
    m = math.prod(lead)

    tm = min(_round_up(tm, 8), _round_up(m, 8))
    m_pad = _round_up(m, tm)

    x2 = x.reshape(m, din).astype(compute_dtype)
    if m_pad != m:
        x2 = jnp.pad(x2, ((0, m_pad - m), (0, 0)))

    # Stacked small params: b1, b2, w3 (as a row), b3 (broadcast). All f32.
    p = jnp.concatenate([
        b1.reshape(1, d).astype(jnp.float32),
        b2.reshape(1, d).astype(jnp.float32),
        w3.reshape(1, d).astype(jnp.float32),
        jnp.broadcast_to(b3.reshape(1, 1).astype(jnp.float32), (1, d)),
    ], axis=0)                                # (4, d)

    w1c = w1.astype(compute_dtype)
    w2c = w2.astype(compute_dtype)

    rep = lambda i: (0, 0)
    out = pl.pallas_call(
        _drloc_mlp_kernel,
        out_shape=jax.ShapeDtypeStruct((m_pad, 1), jnp.float32),
        grid_spec=pltpu.PrefetchScalarGridSpec(
            num_scalar_prefetch=0,
            grid=(m_pad // tm,),
            in_specs=[
                pl.BlockSpec((tm, din), lambda i: (i, 0)),  # x rows (dominant stream)
                pl.BlockSpec((4, d), rep),                  # stacked small params
                pl.BlockSpec((din, d), rep),                # w1
                pl.BlockSpec((d, d), rep),                  # w2
            ],
            out_specs=pl.BlockSpec((tm, 1), lambda i: (i, 0)),
        ),
        compiler_params=pltpu.CompilerParams(
            dimension_semantics=("parallel",),
            vmem_limit_bytes=_VMEM_LIMIT),
    )(x2, p, w1c, w2c)

    out = out[:m, 0] if m_pad != m else out[:, 0]
    return out.reshape(lead)  # == .squeeze(2)


# ------------------------------------------------------------------ params

def _linear_init(key, fan_in, fan_out):
    """PyTorch nn.Linear default init (uniform bound 1/sqrt(fan_in)).
    Weight stored as (in, out) so the kernel does x @ W."""
    kw, kb = jax.random.split(key)
    bound = 1.0 / math.sqrt(fan_in)
    w = jax.random.uniform(kw, (fan_in, fan_out), jnp.float32, -bound, bound)
    b = jax.random.uniform(kb, (1, fan_out), jnp.float32, -bound, bound)
    return w, b


def make_time_mlp_params(key, d=D_MODEL):
    k1, k2, k3 = jax.random.split(key, 3)
    w1, b1 = _linear_init(k1, 2, d)
    w2, b2 = _linear_init(k2, d, d)
    w3, b3 = _linear_init(k3, d, d)
    gamma = jnp.ones((1, d), jnp.float32)
    beta = jnp.zeros((1, d), jnp.float32)
    return (w1, b1, w2, b2, w3, b3, gamma, beta)


def make_drloc_mlp_params(key, d=D_MODEL):
    k1, k2, k3 = jax.random.split(key, 3)
    w1, b1 = _linear_init(k1, 4 * d, d)
    w2, b2 = _linear_init(k2, d, d)
    w3, b3 = _linear_init(k3, d, 1)
    return (w1, b1, w2, b2, w3, b3)


# ------------------------------------------------------------------ pure-JAX reference

def _time_mlp_ref(x, p):
    w1, b1, w2, b2, w3, b3, g, beta = p
    h = jax.nn.relu(x @ w1 + b1)
    h = jax.nn.relu(h @ w2 + b2)
    h = jax.nn.relu(h @ w3 + b3)
    mu = h.mean(-1, keepdims=True)
    var = ((h - mu) ** 2).mean(-1, keepdims=True)
    return (h - mu) / jnp.sqrt(var + LN_EPS) * g + beta


def _drloc_mlp_ref(x, p):
    w1, b1, w2, b2, w3, b3 = p
    h = jax.nn.relu(x @ w1 + b1)
    h = jax.nn.relu(h @ w2 + b2)
    return (h @ w3 + b3)[..., 0]


# ------------------------------------------------------------------ main

if __name__ == "__main__":
    key = jax.random.PRNGKey(0)
    k_tp, k_dp, k_tx, k_dx = jax.random.split(key, 4)

    d = D_MODEL
    time_params = make_time_mlp_params(k_tp, d)
    drloc_params = make_drloc_mlp_params(k_dp, d)

    # time_mlp input: (batch=2, num_feats=8, 2) interval [start, end] encodings
    t_in = jax.random.uniform(k_tx, (2, 8, 2), jnp.float32)
    # drloc_mlp input: (batch=2, num_pairs=4, 4*d_model) concatenated token pairs
    dr_in = jax.random.normal(k_dx, (2, 4, 4 * d), jnp.float32)

    t_out = jax.block_until_ready(time_mlp(t_in, time_params))
    dr_out = jax.block_until_ready(drloc_mlp(dr_in, drloc_params))

    t_ref = _time_mlp_ref(t_in, time_params)
    dr_ref = _drloc_mlp_ref(dr_in, drloc_params)

    assert t_out.shape == (2, 8, d)
    assert dr_out.shape == (2, 4)
    assert jnp.allclose(t_out, t_ref, atol=1e-4, rtol=1e-4)
    assert jnp.allclose(dr_out, dr_ref, atol=1e-4, rtol=1e-4)

    # Ragged shape exercising the padding path (no divisibility assert anymore).
    t_in2 = jax.random.uniform(k_tx, (3, 5, 2), jnp.float32)
    t_out2 = jax.block_until_ready(time_mlp(t_in2, time_params))
    assert t_out2.shape == (3, 5, d)
    assert jnp.allclose(t_out2, _time_mlp_ref(t_in2, time_params), atol=1e-4, rtol=1e-4)

    print("KERNEL_OK")
</pallas_src>

<mosaic_0001>
module attributes {stable_mosaic.version = 11 : i64} {
  func.func @_time_mlp_kernel(%arg0: i32, %arg1: memref<16x2xf32, #tpu.memory_space<vmem>>, %arg2: memref<7x32xf32, #tpu.memory_space<vmem>>, %arg3: memref<32x32xf32, #tpu.memory_space<vmem>>, %arg4: memref<32x32xf32, #tpu.memory_space<vmem>>, %arg5: memref<16x32xf32, #tpu.memory_space<vmem>>) attributes {dimension_semantics = [#tpu.dimension_semantics<parallel>], iteration_bounds = array<i64: 1>, scalar_prefetch = 0 : i64, scratch_operands = 0 : i64, tpu.core_type = #tpu.core_type<tc>, window_params = [{transform_indices = @transform_0, window_bounds = array<i64: 16, 2>}, {pipeline_mode = #tpu.pipeline_mode<synchronous>, transform_indices = @transform_1, window_bounds = array<i64: 7, 32>}, {pipeline_mode = #tpu.pipeline_mode<synchronous>, transform_indices = @transform_2, window_bounds = array<i64: 32, 32>}, {pipeline_mode = #tpu.pipeline_mode<synchronous>, transform_indices = @transform_3, window_bounds = array<i64: 32, 32>}, {transform_indices = @transform_4, window_bounds = array<i64: 16, 32>}]} {
    %c0 = arith.constant 0 : index
    %c0_0 = arith.constant 0 : index
    %0 = vector.load %arg1[%c0, %c0_0] : memref<16x2xf32, #tpu.memory_space<vmem>>, vector<16x2xf32>
    %c0_1 = arith.constant 0 : index
    %c0_2 = arith.constant 0 : index
    %1 = vector.load %arg2[%c0_1, %c0_2] : memref<7x32xf32, #tpu.memory_space<vmem>>, vector<7x32xf32>
    %2 = vector.extract_strided_slice %1 {offsets = [0, 0], sizes = [1, 32], strides = [1, 1]} : vector<7x32xf32> to vector<1x32xf32>
    %3 = vector.extract_strided_slice %1 {offsets = [1, 0], sizes = [1, 32], strides = [1, 1]} : vector<7x32xf32> to vector<1x32xf32>
    %4 = vector.extract_strided_slice %1 {offsets = [2, 0], sizes = [1, 32], strides = [1, 1]} : vector<7x32xf32> to vector<1x32xf32>
    %5 = vector.extract_strided_slice %1 {offsets = [3, 0], sizes = [1, 32], strides = [1, 1]} : vector<7x32xf32> to vector<1x32xf32>
    %6 = vector.extract_strided_slice %1 {offsets = [4, 0], sizes = [1, 32], strides = [1, 1]} : vector<7x32xf32> to vector<1x32xf32>
    %7 = vector.extract_strided_slice %1 {offsets = [5, 0], sizes = [1, 32], strides = [1, 1]} : vector<7x32xf32> to vector<1x32xf32>
    %8 = vector.extract_strided_slice %1 {offsets = [6, 0], sizes = [1, 32], strides = [1, 1]} : vector<7x32xf32> to vector<1x32xf32>
    %9 = vector.extract_strided_slice %0 {offsets = [0, 0], sizes = [16, 1], strides = [1, 1]} : vector<16x2xf32> to vector<16x1xf32>
    %10 = vector.broadcast %9 : vector<16x1xf32> to vector<16x32xf32>
    %11 = vector.broadcast %2 : vector<1x32xf32> to vector<16x32xf32>
    %12 = arith.mulf %10, %11 : vector<16x32xf32>
    %13 = vector.extract_strided_slice %0 {offsets = [0, 1], sizes = [16, 1], strides = [1, 1]} : vector<16x2xf32> to vector<16x1xf32>
    %14 = vector.broadcast %13 : vector<16x1xf32> to vector<16x32xf32>
    %15 = vector.broadcast %3 : vector<1x32xf32> to vector<16x32xf32>
    %16 = arith.mulf %14, %15 : vector<16x32xf32>
    %17 = arith.addf %12, %16 : vector<16x32xf32>
    %18 = vector.broadcast %4 : vector<1x32xf32> to vector<16x32xf32>
    %19 = arith.addf %17, %18 : vector<16x32xf32>
    %cst = arith.constant 0.000000e+00 : f32
    %20 = vector.broadcast %cst : f32 to vector<16x32xf32>
    %21 = arith.maximumf %19, %20 : vector<16x32xf32>
    %c0_3 = arith.constant 0 : index
    %c0_4 = arith.constant 0 : index
    %22 = vector.load %arg3[%c0_3, %c0_4] : memref<32x32xf32, #tpu.memory_space<vmem>>, vector<32x32xf32>
    %cst_5 = arith.constant dense<0.000000e+00> : vector<16x32xf32>
    %23 = tpu.matmul %21, %22, %cst_5 {dimension_numbers = #tpu.dot_dimension_numbers<[1], [0], [0], [1], [0, 0, 1, 1], [], []>} : vector<16x32xf32>, vector<32x32xf32>, vector<16x32xf32> -> vector<16x32xf32>
    %24 = vector.broadcast %5 : vector<1x32xf32> to vector<16x32xf32>
    %25 = arith.addf %23, %24 : vector<16x32xf32>
    %cst_6 = arith.constant 0.000000e+00 : f32
    %26 = vector.broadcast %cst_6 : f32 to vector<16x32xf32>
    %27 = arith.maximumf %25, %26 : vector<16x32xf32>
    %c0_7 = arith.constant 0 : index
    %c0_8 = arith.constant 0 : index
    %28 = vector.load %arg4[%c0_7, %c0_8] : memref<32x32xf32, #tpu.memory_space<vmem>>, vector<32x32xf32>
    %cst_9 = arith.constant dense<0.000000e+00> : vector<16x32xf32>
    %29 = tpu.matmul %27, %28, %cst_9 {dimension_numbers = #tpu.dot_dimension_numbers<[1], [0], [0], [1], [0, 0, 1, 1], [], []>} : vector<16x32xf32>, vector<32x32xf32>, vector<16x32xf32> -> vector<16x32xf32>
    %30 = vector.broadcast %6 : vector<1x32xf32> to vector<16x32xf32>
    %31 = arith.addf %29, %30 : vector<16x32xf32>
    %cst_10 = arith.constant 0.000000e+00 : f32
    %32 = vector.broadcast %cst_10 : f32 to vector<16x32xf32>
    %33 = arith.maximumf %31, %32 : vector<16x32xf32>
    %cst_11 = arith.constant dense<0.000000e+00> : vector<16xf32>
    %34 = vector.multi_reduction <add>, %33, %cst_11 [1] : vector<16x32xf32> to vector<16xf32>
    %35 = vector.shape_cast %34 : vector<16xf32> to vector<16x1xf32>
    %cst_12 = arith.constant 3.200000e+01 : f32
    %36 = vector.broadcast %cst_12 : f32 to vector<16x1xf32>
    %37 = arith.divf %35, %36 : vector<16x1xf32>
    %38 = vector.broadcast %37 : vector<16x1xf32> to vector<16x32xf32>
    %39 = arith.subf %33, %38 : vector<16x32xf32>
    %40 = arith.mulf %39, %39 : vector<16x32xf32>
    %cst_13 = arith.constant dense<0.000000e+00> : vector<16xf32>
    %41 = vector.multi_reduction <add>, %40, %cst_13 [1] : vector<16x32xf32> to vector<16xf32>
    %42 = vector.shape_cast %41 : vector<16xf32> to vector<16x1xf32>
    %cst_14 = arith.constant 3.200000e+01 : f32
    %43 = vector.broadcast %cst_14 : f32 to vector<16x1xf32>
    %44 = arith.divf %42, %43 : vector<16x1xf32>
    %45 = vector.broadcast %37 : vector<16x1xf32> to vector<16x32xf32>
    %46 = arith.subf %33, %45 : vector<16x32xf32>
    %cst_15 = arith.constant 9.99999974E-6 : f32
    %47 = vector.broadcast %cst_15 : f32 to vector<16x1xf32>
    %48 = arith.addf %44, %47 : vector<16x1xf32>
    %49 = math.rsqrt %48 : vector<16x1xf32>
    %50 = vector.broadcast %49 : vector<16x1xf32> to vector<16x32xf32>
    %51 = arith.mulf %46, %50 : vector<16x32xf32>
    %52 = vector.broadcast %7 : vector<1x32xf32> to vector<16x32xf32>
    %53 = arith.mulf %51, %52 : vector<16x32xf32>
    %54 = vector.broadcast %8 : vector<1x32xf32> to vector<16x32xf32>
    %55 = arith.addf %53, %54 : vector<16x32xf32>
    %c0_16 = arith.constant 0 : index
    %c0_17 = arith.constant 0 : index
    %56 = vector.load %arg5[%c0_16, %c0_17] : memref<16x32xf32, #tpu.memory_space<vmem>>, vector<16x32xf32>
    tpu.vector_store %arg5[%c0_16, %c0_17], %55 {strides = array<i32>} : memref<16x32xf32, #tpu.memory_space<vmem>>, vector<16x32xf32>,
    return
  }
  func.func @transform_0(%arg0: i32) -> (i32, i32) {
    %c0_i32 = arith.constant 0 : i32
    %c0_i32_0 = arith.constant 0 : i32
    return %arg0, %c0_i32 : i32, i32
  }
  func.func @transform_1(%arg0: i32) -> (i32, i32) {
    %c0_i32 = arith.constant 0 : i32
    %c0_i32_0 = arith.constant 0 : i32
    %c0_i32_1 = arith.constant 0 : i32
    return %c0_i32, %c0_i32_0 : i32, i32
  }
  func.func @transform_2(%arg0: i32) -> (i32, i32) {
    %c0_i32 = arith.constant 0 : i32
    %c0_i32_0 = arith.constant 0 : i32
    %c0_i32_1 = arith.constant 0 : i32
    return %c0_i32, %c0_i32_0 : i32, i32
  }
  func.func @transform_3(%arg0: i32) -> (i32, i32) {
    %c0_i32 = arith.constant 0 : i32
    %c0_i32_0 = arith.constant 0 : i32
    %c0_i32_1 = arith.constant 0 : i32
    return %c0_i32, %c0_i32_0 : i32, i32
  }
  func.func @transform_4(%arg0: i32) -> (i32, i32) {
    %c0_i32 = arith.constant 0 : i32
    %c0_i32_0 = arith.constant 0 : i32
    return %arg0, %c0_i32 : i32, i32
  }
}

</mosaic_0001>

<llo_original>
// kernel: tpu_custom_call.1
$region0: #{tpu_custom_call.1}
  #allocation0 [shape = 'u32[]', space=smem, size = 0x4, offset = 0x4, fixed_abs, tag = 'smem constant byte address 0x4 - core index']
  #allocation1 [shape = 'u32[144,128]{1,0:T(1,128)}', space=vmem, size = 0x12000, scoped, tag = 'internal scratch']
  %s0 = inlined_call_operand.vmem [shape: f32[16,2], index: 0, kind: input, shape index: {}]
  %s1 = inlined_call_operand.vmem [shape: f32[7,32], index: 1, kind: input, shape index: {}]
  %s2 = inlined_call_operand.hbm [shape: f32[32,32], index: 2, kind: input, shape index: {}]
  %s3 = inlined_call_operand.hbm [shape: f32[32,32], index: 3, kind: input, shape index: {}]
  %s4 = inlined_call_operand.hbm [shape: f32[16,32], index: 4, kind: output, shape index: {}]
  %s5 = sld [smem:[#allocation0]]
  $region34: #{tpu_custom_call.1} parent=0
    _
  %s7 = ssub.s32 1, %s5
  %s8 = scalar_select 0, %s7, %s5
  $region1: #{tpu_custom_call.1} parent=0
    #allocation2 [shape = 'u8[16384]{0}', space=vmem, size = 0x4000, scoped, tag = 'input window, operand 2, single buffered']
    #allocation3 [shape = 's32[1]{0}', space=sflag, size = 0x4, scoped, tag = 'scoped memory for tpu_custom_call.1']
    #allocation4 [shape = 's32[1]{0}', space=sflag, size = 0x4, scoped, tag = 'scoped memory for tpu_custom_call.1']
    #allocation5 [shape = 'u8[16384]{0}', space=vmem, size = 0x4000, scoped, tag = 'input window, operand 3, single buffered']
    #allocation6 [shape = 's32[1]{0}', space=sflag, size = 0x4, scoped, tag = 'scoped memory for tpu_custom_call.1']
    #allocation7 [shape = 'u8[8192]{0}', space=vmem, size = 0x2000, scoped, tag = 'output window, operand 0, single buffered']
    %9 = vsyncpa [#allocation3], 0
    %10 = vsyncpa [#allocation6], 0
    %11 = vsyncpa [#allocation4], 0
    // Predicated region
    $region2: #{tpu_custom_call.1} parent=1 // pred_check
      _
    $region3: #{tpu_custom_call.1} parent=1 // pred_check_branch
      %13 = sbr.rel (0) target = $region5
    $region4: #{tpu_custom_call.1} parent=1 // pred_region
      _
    $region5: #{tpu_custom_call.1} parent=1 // pred_fallthru
      _
    // Predicated region
    $region6: #{tpu_custom_call.1} parent=1 // pred_check
      _
    $region7: #{tpu_custom_call.1} parent=1 // pred_check_branch
      %15 = sbr.rel (0) target = $region9
    $region8: #{tpu_custom_call.1} parent=1 // pred_region
      _
    $region9: #{tpu_custom_call.1} parent=1 // pred_fallthru
      _
    // Predicated region
    $region10: #{tpu_custom_call.1} parent=1 // pred_check
      _
    $region11: #{tpu_custom_call.1} parent=1 // pred_check_branch
      %17 = sbr.rel (0) target = $region13
    $region12: #{tpu_custom_call.1} parent=1 // pred_region
      %s19 = ssub.s32 512, 512
      %20 = vsyncadd [#allocation3], %s19
      %s21 = sshll.u32 [#allocation2], 4
      %s22 = int_to_ptr.vmem [resolvable:$true] %s21
      %27 = dma.hbm_to_vmem [thread:$0]  %s2, 512, %s22, [#allocation3], 128, 128, 8
    $region13: #{tpu_custom_call.1} parent=1 // pred_fallthru
      _
    // Predicated region
    $region14: #{tpu_custom_call.1} parent=1 // pred_check
      _
    $region15: #{tpu_custom_call.1} parent=1 // pred_check_branch
      %29 = sbr.rel (0) target = $region17
    $region16: #{tpu_custom_call.1} parent=1 // pred_region
      %s31 = ssub.s32 512, 512
      %32 = vsyncadd [#allocation6], %s31
      %s33 = sshll.u32 [#allocation5], 4
      %s34 = int_to_ptr.vmem [resolvable:$true] %s33
      %39 = dma.hbm_to_vmem [thread:$0]  %s3, 512, %s34, [#allocation6], 128, 128, 8
    $region17: #{tpu_custom_call.1} parent=1 // pred_fallthru
      _
    // Predicated region
    $region18: #{tpu_custom_call.1} parent=1 // pred_check
      _
    $region19: #{tpu_custom_call.1} parent=1 // pred_check_branch
      %41 = sbr.rel (0) target = $region21
    $region20: #{tpu_custom_call.1} parent=1 // pred_region
      %42 = dma.done [#allocation3], 512
    $region21: #{tpu_custom_call.1} parent=1 // pred_fallthru
      _
    // Predicated region
    $region22: #{tpu_custom_call.1} parent=1 // pred_check
      _
    $region23: #{tpu_custom_call.1} parent=1 // pred_check_branch
      %44 = sbr.rel (0) target = $region25
    $region24: #{tpu_custom_call.1} parent=1 // pred_region
      %45 = dma.done [#allocation6], 512
    $region25: #{tpu_custom_call.1} parent=1 // pred_fallthru
      _
    %v46 = vld [vmem:[%s0] sm:$0xff]
    %v47 = vld [vmem:[%s0 + $0x8] sm:$0xff]
    %v48 = vld [vmem:[%s1] sm:$0x7f]
    %50 = vset.pattern.permute.xlu0 0
    %51 = vperm.xlu0 %50, %v46
    %v52 = vpop.permute.xlu0 %51
    %55 = vset.pattern.permute.xlu0 0
    %56 = vperm.xlu0 %55, %v47
    %v57 = vpop.permute.xlu0 %56
    %v59 = vlaneseq
    %v60 = vshrl.u32 %v59, 7
    %v61 = vsub.s32 0, %v60
    %v62 = vrot.slane %v48, %v61
    %v63 = vmul.f32 %v52, %v62
    %v64 = vmul.f32 %v57, %v62
    %65 = vset.pattern.permute.xlu0 1
    %66 = vperm.xlu0 %65, %v46
    %v67 = vpop.permute.xlu0 %66
    %69 = vset.pattern.permute.xlu0 1
    %70 = vperm.xlu0 %69, %v47
    %v71 = vpop.permute.xlu0 %70
    %v73 = vlaneseq
    %v74 = vshrl.u32 %v73, 7
    %v75 = vsub.s32 1, %v74
    %v76 = vrot.slane %v48, %v75
    %v77 = vmul.f32 %v67, %v76
    %v78 = vmul.f32 %v71, %v76
    %v79 = vadd.f32 %v63, %v77
    %v80 = vadd.f32 %v64, %v78
    %v81 = vlaneseq
    %v82 = vshrl.u32 %v81, 7
    %v83 = vsub.s32 2, %v82
    %v84 = vrot.slane %v48, %v83
    %v85 = vadd.f32 %v79, %v84
    %v86 = vadd.f32 %v80, %v84
    %v87 = vmax.f32 %v85, 0.0
    %v88 = vmax.f32 %v86, 0.0
    %v89 = vld [vmem:[#allocation2] sm:$0xff]
    %v90 = vld [vmem:[#allocation2 + $0x8] sm:$0xff]
    %v91 = vld [vmem:[#allocation2 + $0x10] sm:$0xff]
    %v92 = vld [vmem:[#allocation2 + $0x18] sm:$0xff]
    %v93 = vlaneseq
    %v94 = vshrl.u32 %v93, 7
    %v95 = vsub.s32 3, %v94
    %v96 = vrot.slane %v48, %v95
    %vm97 = vcmask 261120
    %v99 = vsel %vm97, %v87, 0
    %v102 = vsel %vm97, %v88, 0
    %104 = vmatprep.subr.mxu0 0.0
    %105 = vmatpush1.msra.mxu0 %v89
    %106 = vmatprep.subr.mxu0 0.0
    %107 = vmatpush1.msra.mxu0 %v90
    %108 = vmatprep.subr.mxu0 0.0
    %109 = vmatpush1.msra.mxu0 %v91
    %110 = vmatprep.subr.mxu0 0.0
    %111 = vmatpush1.msra.mxu0 %v92
    %112 = vmatprep.subr.mxu0 0.0
    %113 = vmatpush1.msra.mxu0 0.0
    %114 = vmatprep.subr.mxu0 0.0
    %115 = vmatpush1.msra.mxu0 0.0
    %116 = vmatprep.subr.mxu0 0.0
    %117 = vmatpush1.msra.mxu0 0.0
    %118 = vmatprep.subr.mxu0 0.0
    %119 = vmatpush1.msra.mxu0 0.0
    %120 = vmatprep.subr.mxu0 0.0
    %121 = vmatpush1.msra.mxu0 0.0
    %122 = vmatprep.subr.mxu0 0.0
    %123 = vmatpush1.msra.mxu0 0.0
    %124 = vmatprep.subr.mxu0 0.0
    %125 = vmatpush1.msra.mxu0 0.0
    %126 = vmatprep.subr.mxu0 0.0
    %127 = vmatpush1.msra.mxu0 0.0
    %128 = vmatprep.subr.mxu0 0.0
    %129 = vmatpush1.msra.mxu0 0.0
    %130 = vmatprep.subr.mxu0 0.0
    %131 = vmatpush1.msra.mxu0 0.0
    %132 = vmatprep.subr.mxu0 0.0
    %133 = vmatpush1.msra.mxu0 0.0
    %134 = vmatprep.subr.mxu0 0.0
    %135 = vmatpush1.msra.mxu0 0.0
    %136 = vmatprep.subr.mxu0 0.0
    %137 = vmatpush1.msra.mxu0 0.0
    %138 = vmatprep.subr.mxu0 0.0
    %139 = vmatpush1.msra.mxu0 0.0
    %140 = vmatprep.subr.mxu0 0.0
    %141 = vmatpush1.msra.mxu0 0.0
    %142 = vmatprep.subr.mxu0 0.0
    %143 = vmatpush1.msra.mxu0 0.0
    %144 = vmatprep.subr.mxu0 0.0
    %145 = vmatpush1.msra.mxu0 0.0
    %146 = vmatprep.subr.mxu0 0.0
    %147 = vmatpush1.msra.mxu0 0.0
    %148 = vmatprep.subr.mxu0 0.0
    %149 = vmatpush1.msra.mxu0 0.0
    %150 = vmatprep.subr.mxu0 0.0
    %151 = vmatpush1.msra.mxu0 0.0
    %152 = vmatprep.subr.mxu0 0.0
    %153 = vmatpush1.msra.mxu0 0.0
    %154 = vmatprep.subr.mxu0 0.0
    %155 = vmatpush1.msra.mxu0 0.0
    %156 = vmatprep.subr.mxu0 0.0
    %157 = vmatpush1.msra.mxu0 0.0
    %158 = vmatprep.subr.mxu0 0.0
    %159 = vmatpush1.msra.mxu0 0.0
    %160 = vmatprep.subr.mxu0 0.0
    %161 = vmatpush1.msra.mxu0 0.0
    %162 = vmatprep.subr.mxu0 0.0
    %163 = vmatpush1.msra.mxu0 0.0
    %164 = vmatprep.subr.mxu0 0.0
    %165 = vmatpush1.msra.mxu0 0.0
    %166 = vmatprep.subr.mxu0 0.0
    %167 = vmatpush1.msra.mxu0 0.0
    %168 = vmatprep.mubr.f32.mxu0 0.0
    %169 = vmatmul.mubr.f32.gmra.mrb[0].mxu0 %v99
    %v170 = vpop.f32.mrb[0].mxu0
    %v171 = vadd.f32 %v96, %v170
    %v172 = vpop.f32.mrb[0].mxu0
    %173 = vmatprep.mubr.f32.mxu0 0.0
    %174 = vmatmul.mubr.f32.gmra.mrb[0].mxu0 %v102
    %v175 = vpop.f32.mrb[0].mxu0
    %v176 = vadd.f32 %v96, %v175
    %v177 = vpop.f32.mrb[0].mxu0
    %178 = vdwg.mxu0
    %v179 = vmax.f32 %v171, 0.0
    %v180 = vmax.f32 %v176, 0.0
    %v181 = vld [vmem:[#allocation5] sm:$0xff]
    %v182 = vld [vmem:[#allocation5 + $0x8] sm:$0xff]
    %v183 = vld [vmem:[#allocation5 + $0x10] sm:$0xff]
    %v184 = vld [vmem:[#allocation5 + $0x18] sm:$0xff]
    %v185 = vlaneseq
    %v186 = vshrl.u32 %v185, 7
    %v187 = vsub.s32 4, %v186
    %v188 = vrot.slane %v48, %v187
    %v190 = vsel %vm97, %v179, 0
    %v193 = vsel %vm97, %v180, 0
    %195 = vmatprep.subr.mxu0 0.0
    %196 = vmatpush1.msra.mxu0 %v181
    %197 = vmatprep.subr.mxu0 0.0
    %198 = vmatpush1.msra.mxu0 %v182
    %199 = vmatprep.subr.mxu0 0.0
    %200 = vmatpush1.msra.mxu0 %v183
    %201 = vmatprep.subr.mxu0 0.0
    %202 = vmatpush1.msra.mxu0 %v184
    %203 = vmatprep.subr.mxu0 0.0
    %204 = vmatpush1.msra.mxu0 0.0
    %205 = vmatprep.subr.mxu0 0.0
    %206 = vmatpush1.msra.mxu0 0.0
    %207 = vmatprep.subr.mxu0 0.0
    %208 = vmatpush1.msra.mxu0 0.0
    %209 = vmatprep.subr.mxu0 0.0
    %210 = vmatpush1.msra.mxu0 0.0
    %211 = vmatprep.subr.mxu0 0.0
    %212 = vmatpush1.msra.mxu0 0.0
    %213 = vmatprep.subr.mxu0 0.0
    %214 = vmatpush1.msra.mxu0 0.0
    %215 = vmatprep.subr.mxu0 0.0
    %216 = vmatpush1.msra.mxu0 0.0
    %217 = vmatprep.subr.mxu0 0.0
    %218 = vmatpush1.msra.mxu0 0.0
    %219 = vmatprep.subr.mxu0 0.0
    %220 = vmatpush1.msra.mxu0 0.0
    %221 = vmatprep.subr.mxu0 0.0
    %222 = vmatpush1.msra.mxu0 0.0
    %223 = vmatprep.subr.mxu0 0.0
    %224 = vmatpush1.msra.mxu0 0.0
    %225 = vmatprep.subr.mxu0 0.0
    %226 = vmatpush1.msra.mxu0 0.0
    %227 = vmatprep.subr.mxu0 0.0
    %228 = vmatpush1.msra.mxu0 0.0
    %229 = vmatprep.subr.mxu0 0.0
    %230 = vmatpush1.msra.mxu0 0.0
    %231 = vmatprep.subr.mxu0 0.0
    %232 = vmatpush1.msra.mxu0 0.0
    %233 = vmatprep.subr.mxu0 0.0
    %234 = vmatpush1.msra.mxu0 0.0
    %235 = vmatprep.subr.mxu0 0.0
    %236 = vmatpush1.msra.mxu0 0.0
    %237 = vmatprep.subr.mxu0 0.0
    %238 = vmatpush1.msra.mxu0 0.0
    %239 = vmatprep.subr.mxu0 0.0
    %240 = vmatpush1.msra.mxu0 0.0
    %241 = vmatprep.subr.mxu0 0.0
    %242 = vmatpush1.msra.mxu0 0.0
    %243 = vmatprep.subr.mxu0 0.0
    %244 = vmatpush1.msra.mxu0 0.0
    %245 = vmatprep.subr.mxu0 0.0
    %246 = vmatpush1.msra.mxu0 0.0
    %247 = vmatprep.subr.mxu0 0.0
    %248 = vmatpush1.msra.mxu0 0.0
    %249 = vmatprep.subr.mxu0 0.0
    %250 = vmatpush1.msra.mxu0 0.0
    %251 = vmatprep.subr.mxu0 0.0
    %252 = vmatpush1.msra.mxu0 0.0
    %253 = vmatprep.subr.mxu0 0.0
    %254 = vmatpush1.msra.mxu0 0.0
    %255 = vmatprep.subr.mxu0 0.0
    %256 = vmatpush1.msra.mxu0 0.0
    %257 = vmatprep.subr.mxu0 0.0
    %258 = vmatpush1.msra.mxu0 0.0
    %259 = vmatprep.mubr.f32.mxu0 0.0
    %260 = vmatmul.mubr.f32.gmra.mrb[0].mxu0 %v190
    %v261 = vpop.f32.mrb[0].mxu0
    %v262 = vadd.f32 %v188, %v261
    %v263 = vpop.f32.mrb[0].mxu0
    %264 = vmatprep.mubr.f32.mxu0 0.0
    %265 = vmatmul.mubr.f32.gmra.mrb[0].mxu0 %v193
    %v266 = vpop.f32.mrb[0].mxu0
    %v267 = vadd.f32 %v188, %v266
    %v268 = vpop.f32.mrb[0].mxu0
    %269 = vdwg.mxu0
    %v270 = vmax.f32 %v262, 0.0
    %v271 = vmax.f32 %v267, 0.0
    %v272 = vsel %vm97, %v270, 0.0
    %273 = vadd.xlane.f32.xlu0 %v272
    %v274 = vpop.xlane.xlu0 %273
    %v275 = vsel %vm97, %v271, 0.0
    %276 = vadd.xlane.f32.xlu0 %v275
    %v277 = vpop.xlane.xlu0 %276
    %v278 = vrcp.pop 32.0
    %v279 = vmul.f32 %v274, %v278
    %v280 = vmul.f32 %v277, %v278
    %v281 = vsub.f32 %v270, %v279
    %v282 = vsub.f32 %v271, %v280
    %v283 = vmul.f32 %v281, %v281
    %v284 = vmul.f32 %v282, %v282
    %v285 = vsel %vm97, %v283, 0.0
    %286 = vadd.xlane.f32.xlu0 %v285
    %v287 = vpop.xlane.xlu0 %286
    %v288 = vsel %vm97, %v284, 0.0
    %289 = vadd.xlane.f32.xlu0 %v288
    %v290 = vpop.xlane.xlu0 %289
    %v291 = vmul.f32 %v287, %v278
    %v292 = vmul.f32 %v290, %v278
    %v293 = vadd.f32 %v291, 1e-05
    %v294 = vadd.f32 %v292, 1e-05
    %v295 = vrsqrt.pop %v293
    %v296 = vrsqrt.pop %v294
    %v297 = vmul.f32 %v281, %v295
    %v298 = vmul.f32 %v282, %v296
    %v299 = vlaneseq
    %v300 = vshrl.u32 %v299, 7
    %v301 = vsub.s32 5, %v300
    %v302 = vrot.slane %v48, %v301
    %v303 = vmul.f32 %v297, %v302
    %v304 = vmul.f32 %v298, %v302
    %v305 = vlaneseq
    %v306 = vshrl.u32 %v305, 7
    %v307 = vsub.s32 6, %v306
    %v308 = vrot.slane %v48, %v307
    %v309 = vadd.f32 %v303, %v308
    %v310 = vadd.f32 %v304, %v308
    %311 = vst.msk [vmem:[#allocation7] sm:$0xff] %vm97, %v309
    %312 = vst.msk [vmem:[#allocation7 + $0x8] sm:$0xff] %vm97, %v310
    // Predicated region
    $region26: #{tpu_custom_call.1} parent=1 // pred_check
      _
    $region27: #{tpu_custom_call.1} parent=1 // pred_check_branch
      %314 = sbr.rel (0) target = $region29
    $region28: #{tpu_custom_call.1} parent=1 // pred_region
      %s316 = ssub.s32 256, 256
      %317 = vsyncadd [#allocation4], %s316
      %s318 = sshll.u32 [#allocation7], 4
      %s319 = int_to_ptr.vmem [resolvable:$true] %s318
      %324 = dma.vmem_to_hbm [thread:$0]  %s319, 256, %s4, [#allocation4], 128, 128, 8
    $region29: #{tpu_custom_call.1} parent=1 // pred_fallthru
      _
    // Predicated region
    $region30: #{tpu_custom_call.1} parent=1 // pred_check
      _
    $region31: #{tpu_custom_call.1} parent=1 // pred_check_branch
      %326 = sbr.rel (0) target = $region33
    $region32: #{tpu_custom_call.1} parent=1 // pred_region
      %327 = dma.done [#allocation4], 256
    $region33: #{tpu_custom_call.1} parent=1 // pred_fallthru
      _
    %328 = vsyncpa [#allocation3], 1
    %329 = vsyncpa [#allocation6], 1
    %330 = vsyncpa [#allocation4], 1

</llo_original>
